<compile_context>
chip_gen: v7x
topology: tpu7x:2x2x1
jax: 0.10.0
libtpu: 0.0.40
codegen_flags: <defaults>
</compile_context>

<pallas_src>
import functools

import jax
import jax.numpy as jnp
from jax.experimental import pallas as pl
from jax.experimental.pallas import tpu as pltpu

TB_MAX = 512                        # max batch tile        (multiple of 8)
TO_MAX = 2048                       # max out-feature tile  (multiple of 128)
VMEM_BUDGET = 40 * 1024 * 1024      # working-set budget used for path choice
VMEM_LIMIT = 48 * 1024 * 1024       # explicit scoped-VMEM limit for Mosaic

# op_i(a, b) = c0 + c1*a + c2*b + c3*(a*b)   -- the 16 difflogic binary ops.
_OP_COEFFS = jnp.array(
    [
        #  1     a     b    ab
        [0.0,  0.0,  0.0,  0.0],   # 0 : False
        [0.0,  0.0,  0.0,  1.0],   # 1 : a AND b
        [0.0,  1.0,  0.0, -1.0],   # 2 : a AND NOT b
        [0.0,  1.0,  0.0,  0.0],   # 3 : a
        [0.0,  0.0,  1.0, -1.0],   # 4 : NOT a AND b
        [0.0,  0.0,  1.0,  0.0],   # 5 : b
        [0.0,  1.0,  1.0, -2.0],   # 6 : a XOR b
        [0.0,  1.0,  1.0, -1.0],   # 7 : a OR b
        [1.0, -1.0, -1.0,  1.0],   # 8 : NOR
        [1.0, -1.0, -1.0,  2.0],   # 9 : XNOR
        [1.0,  0.0, -1.0,  0.0],   # 10: NOT b
        [1.0,  0.0, -1.0,  1.0],   # 11: b -> a
        [1.0, -1.0,  0.0,  0.0],   # 12: NOT a
        [1.0, -1.0,  0.0,  1.0],   # 13: a -> b
        [1.0,  0.0,  0.0, -1.0],   # 14: NAND
        [1.0,  0.0,  0.0,  0.0],   # 15: True
    ],
    dtype=jnp.float32,
)


def _poly(a, b, c):
    """out = W0 + Wa*a + Wb*b + Wab*(a*b), factored to 3 mul + 3 add.

    a, b : (tb, to) float32
    c    : (8, to)  float32   rows 0..3 = W0, Wa, Wb, Wab (rows 4..7 padding)
    """
    w0 = c[0:1, :]
    wa = c[1:2, :]
    wb = c[2:3, :]
    wab = c[3:4, :]
    return w0 + wb * b + a * (wa + wab * b)


def _fused_kernel(x_ref, sa_ref, sb_ref, c_ref, o_ref):
    """Static gather fused as one-hot selector matmuls on the (idle) MXU."""
    x = x_ref[...]
    a = jnp.dot(x, sa_ref[...], preferred_element_type=jnp.float32)
    b = jnp.dot(x, sb_ref[...], preferred_element_type=jnp.float32)
    o_ref[...] = _poly(a, b, c_ref[...])


def _gather_kernel(a_ref, b_ref, c_ref, o_ref):
    """Polynomial on pre-gathered operand streams (large-in_dim fallback)."""
    a = a_ref[...].astype(jnp.float32)   # upcast in-kernel (free VPU filler)
    b = b_ref[...].astype(jnp.float32)
    o_ref[...] = _poly(a, b, c_ref[...])


def _op_coeffs(weights, training):
    """Fold the per-gate op weights into 4 polynomial coefficients / output."""
    out_dim, n_ops = weights.shape
    wf = weights.astype(jnp.float32)
    if training:
        w = jax.nn.softmax(wf, axis=-1)                              # (O, n_ops)
    else:
        # Original does one_hot(argmax, 16); argmax < n_ops so this matches.
        w = jax.nn.one_hot(jnp.argmax(wf, axis=-1), n_ops, dtype=jnp.float32)
    # HIGHEST precision so the fold is exact f32 (tiny matrix, cost-free).
    coeffs = jnp.einsum("oc,cp->op", w, _OP_COEFFS[:n_ops],
                        precision=jax.lax.Precision.HIGHEST)         # (O, 4)
    return jnp.zeros((8, out_dim), jnp.float32).at[:4].set(coeffs.T)  # (8, O)


def _tile(n, cap):
    # Full dim if it fits (no divisibility constraint), otherwise the aligned cap.
    return n if n <= cap else cap


@functools.partial(jax.jit, static_argnames=("training", "stream_bf16"))
def logic_layer_forward(x, weights, idx_a, idx_b, *, training=True,
                        stream_bf16=False):
    """Forward pass of LogicLayer.

    x       : (batch, in_dim)  float
    weights : (out_dim, n_ops) float   raw pre-softmax op parameters (n_ops<=16)
    idx_a   : (out_dim,)       int     static input connections, operand a
    idx_b   : (out_dim,)       int     static input connections, operand b
    returns : (batch, out_dim) float32
    """
    batch, in_dim = x.shape
    out_dim = idx_a.shape[0]

    tb = _tile(batch, TB_MAX)
    to = _tile(out_dim, TO_MAX)
    # Feature axis outer (slow), batch axis inner (fast): selector / coeff
    # blocks have a constant block index across the inner loop -> DMA skipped.
    grid = (pl.cdiv(out_dim, to), pl.cdiv(batch, tb))
    n_out_tiles = grid[0]

    stream_dtype = jnp.bfloat16 if stream_bf16 else jnp.float32
    sb_ = jnp.dtype(stream_dtype).itemsize

    coeffs = _op_coeffs(weights, training)                   # (8, out_dim) f32
    idx_a = idx_a.astype(jnp.int32)
    idx_b = idx_b.astype(jnp.int32)

    # --- static path choice: fused one-hot MXU gather vs. XLA gather ---------
    fused_hbm = (n_out_tiles * batch * in_dim * sb_          # x re-read / out tile
                 + 2 * in_dim * out_dim * sb_                # two selector matrices
                 + batch * out_dim * 4)                      # output
    gather_hbm = (batch * in_dim * sb_                       # x read by XLA gather
                  + 4 * batch * out_dim * sb_                # a/b written + re-read
                  + batch * out_dim * 4)                     # output
    fused_vmem = (2 * tb * in_dim * sb_ + 4 * in_dim * to * sb_
                  + 2 * 8 * to * 4 + 2 * tb * to * 4)        # double-buffered
    use_fused = (fused_hbm <= gather_hbm) and (fused_vmem <= VMEM_BUDGET)

    compiler_params = pltpu.CompilerParams(
        # Both axes are embarrassingly parallel (no cross-step accumulation),
        # so megacore parts (v7x) can shard either axis.
        dimension_semantics=("parallel", "parallel"),
        vmem_limit_bytes=VMEM_LIMIT,
    )
    out_shape = jax.ShapeDtypeStruct((batch, out_dim), jnp.float32)
    out_spec = pl.BlockSpec((tb, to), lambda j, i: (i, j))
    coeff_spec = pl.BlockSpec((8, to), lambda j, i: (0, j))

    if use_fused:
        x_s = x.astype(stream_dtype)
        sel_a = jax.nn.one_hot(idx_a, in_dim, dtype=stream_dtype).T  # (in, out)
        sel_b = jax.nn.one_hot(idx_b, in_dim, dtype=stream_dtype).T
        return pl.pallas_call(
            _fused_kernel,
            out_shape=out_shape,
            grid=grid,
            in_specs=[
                pl.BlockSpec((tb, in_dim), lambda j, i: (i, 0)),
                pl.BlockSpec((in_dim, to), lambda j, i: (0, j)),
                pl.BlockSpec((in_dim, to), lambda j, i: (0, j)),
                coeff_spec,
            ],
            out_specs=out_spec,
            compiler_params=compiler_params,
        )(x_s, sel_a, sel_b, coeffs)

    # Fallback: XLA static gather + streaming polynomial kernel (no padding).
    x_s = x.astype(stream_dtype)
    a = jnp.take(x_s, idx_a, axis=1)                          # (batch, out_dim)
    b = jnp.take(x_s, idx_b, axis=1)
    return pl.pallas_call(
        _gather_kernel,
        out_shape=out_shape,
        grid=grid,
        in_specs=[
            pl.BlockSpec((tb, to), lambda j, i: (i, j)),
            pl.BlockSpec((tb, to), lambda j, i: (i, j)),
            coeff_spec,
        ],
        out_specs=out_spec,
        compiler_params=compiler_params,
    )(a, b, coeffs)


@functools.partial(jax.jit, static_argnames=("training",))
def _reference_forward(x, weights, idx_a, idx_b, training=True):
    """Pure-JAX reference (explicit 16-op form, MXU-free so it is exact f32)."""
    a = x[:, idx_a].astype(jnp.float32)
    b = x[:, idx_b].astype(jnp.float32)
    ab = a * b
    ops = jnp.stack(
        [jnp.zeros_like(a), ab, a - ab, a, b - ab, b,
         a + b - 2 * ab, a + b - ab, 1 - (a + b - ab), 1 - (a + b - 2 * ab),
         1 - b, 1 - b + ab, 1 - a, 1 - a + ab, 1 - ab, jnp.ones_like(a)],
        axis=-1)                                                 # (B, O, 16)
    n_ops = weights.shape[-1]
    if training:
        w = jax.nn.softmax(weights.astype(jnp.float32), axis=-1)
        w = jnp.pad(w, ((0, 0), (0, 16 - n_ops)))
    else:
        w = jax.nn.one_hot(jnp.argmax(weights, -1), 16, dtype=jnp.float32)
    return jnp.sum(ops * w[None, :, :], axis=-1)                 # (B, O)


def _make_random_connections(key, in_dim, out_dim):
    """connections == 'random': c = randperm(2*out) % in; c = randperm(in)[c]."""
    k1, k2 = jax.random.split(key)
    c = jax.random.permutation(k1, 2 * out_dim) % in_dim
    c = jax.random.permutation(k2, in_dim)[c]
    c = c.reshape(2, out_dim).astype(jnp.int32)
    return c[0], c[1]


if __name__ == "__main__":
    key = jax.random.PRNGKey(0)

    # (batch, in_dim, out_dim); the mix exercises both kernel paths and
    # cdiv-grid edge masking on both axes.
    cases = [
        (4, 16, 32),        # tiny            -> gather path, single tile
        (20, 48, 300),      # odd sizes       -> gather path, single tile
        (256, 64, 512),     # batch >> in_dim -> fused MXU-gather path
        (523, 64, 2100),    # fused path, multi-tile grid, edge tiles both axes
        (8, 4200, 2100),    # large in_dim    -> gather path, multi-tile features
    ]

    for (batch, in_dim, out_dim) in cases:
        key, k_x, k_w, k_c = jax.random.split(key, 4)

        # torch.randn(out_dim, 6) analogue.
        weights = jax.random.normal(k_w, (out_dim, 6), dtype=jnp.float32)
        idx_a, idx_b = _make_random_connections(k_c, in_dim, out_dim)

        # Relaxed boolean activations in [0, 1]. Quantized to bf16-representable
        # values so the correctness check is independent of how many MXU passes
        # the f32 selection matmul uses on a given TPU generation.
        x = jax.random.uniform(k_x, (batch, in_dim), dtype=jnp.float32)
        x = x.astype(jnp.bfloat16).astype(jnp.float32)

        for training in (True, False):
            out = logic_layer_forward(x, weights, idx_a, idx_b,
                                      training=training)
            jax.block_until_ready(out)
            ref = _reference_forward(x, weights, idx_a, idx_b,
                                     training=training)
            assert out.shape == (batch, out_dim)
            assert jnp.allclose(out, ref, atol=1e-5, rtol=1e-5), \
                (batch, in_dim, out_dim, training)

    # Optional bf16 streaming variant (numerics trade-off, gated behind a flag).
    key, k_x, k_w, k_c = jax.random.split(key, 4)
    batch, in_dim, out_dim = 256, 64, 512
    weights = jax.random.normal(k_w, (out_dim, 6), dtype=jnp.float32)
    idx_a, idx_b = _make_random_connections(k_c, in_dim, out_dim)
    x = jax.random.uniform(k_x, (batch, in_dim), dtype=jnp.float32)
    x = x.astype(jnp.bfloat16).astype(jnp.float32)
    out16 = logic_layer_forward(x, weights, idx_a, idx_b, training=True,
                                stream_bf16=True)
    jax.block_until_ready(out16)
    ref = _reference_forward(x, weights, idx_a, idx_b, training=True)
    assert jnp.allclose(out16, ref, atol=1e-2, rtol=1e-2)

    print("KERNEL_OK")
</pallas_src>

<mosaic_0001>
module attributes {stable_mosaic.version = 11 : i64} {
  func.func @_gather_kernel(%arg0: i32, %arg1: i32, %arg2: memref<4x32xf32, #tpu.memory_space<vmem>>, %arg3: memref<4x32xf32, #tpu.memory_space<vmem>>, %arg4: memref<8x32xf32, #tpu.memory_space<vmem>>, %arg5: memref<4x32xf32, #tpu.memory_space<vmem>>) attributes {dimension_semantics = [#tpu.dimension_semantics<parallel>, #tpu.dimension_semantics<parallel>], iteration_bounds = array<i64: 1, 1>, scalar_prefetch = 0 : i64, scratch_operands = 0 : i64, tpu.core_type = #tpu.core_type<tc>, window_params = [{transform_indices = @transform_0, window_bounds = array<i64: 4, 32>}, {transform_indices = @transform_1, window_bounds = array<i64: 4, 32>}, {transform_indices = @transform_2, window_bounds = array<i64: 8, 32>}, {transform_indices = @transform_3, window_bounds = array<i64: 4, 32>}]} {
    %c0 = arith.constant 0 : index
    %c0_0 = arith.constant 0 : index
    %0 = vector.load %arg2[%c0, %c0_0] : memref<4x32xf32, #tpu.memory_space<vmem>>, vector<4x32xf32>
    %c0_1 = arith.constant 0 : index
    %c0_2 = arith.constant 0 : index
    %1 = vector.load %arg3[%c0_1, %c0_2] : memref<4x32xf32, #tpu.memory_space<vmem>>, vector<4x32xf32>
    %c0_3 = arith.constant 0 : index
    %c0_4 = arith.constant 0 : index
    %2 = vector.load %arg4[%c0_3, %c0_4] : memref<8x32xf32, #tpu.memory_space<vmem>>, vector<8x32xf32>
    %3 = vector.extract_strided_slice %2 {offsets = [0, 0], sizes = [1, 32], strides = [1, 1]} : vector<8x32xf32> to vector<1x32xf32>
    %4 = vector.extract_strided_slice %2 {offsets = [1, 0], sizes = [1, 32], strides = [1, 1]} : vector<8x32xf32> to vector<1x32xf32>
    %5 = vector.extract_strided_slice %2 {offsets = [2, 0], sizes = [1, 32], strides = [1, 1]} : vector<8x32xf32> to vector<1x32xf32>
    %6 = vector.extract_strided_slice %2 {offsets = [3, 0], sizes = [1, 32], strides = [1, 1]} : vector<8x32xf32> to vector<1x32xf32>
    %7 = vector.broadcast %5 : vector<1x32xf32> to vector<4x32xf32>
    %8 = arith.mulf %7, %1 : vector<4x32xf32>
    %9 = vector.broadcast %3 : vector<1x32xf32> to vector<4x32xf32>
    %10 = arith.addf %9, %8 : vector<4x32xf32>
    %11 = vector.broadcast %6 : vector<1x32xf32> to vector<4x32xf32>
    %12 = arith.mulf %11, %1 : vector<4x32xf32>
    %13 = vector.broadcast %4 : vector<1x32xf32> to vector<4x32xf32>
    %14 = arith.addf %13, %12 : vector<4x32xf32>
    %15 = arith.mulf %0, %14 : vector<4x32xf32>
    %16 = arith.addf %10, %15 : vector<4x32xf32>
    %c0_5 = arith.constant 0 : index
    %c0_6 = arith.constant 0 : index
    %17 = vector.load %arg5[%c0_5, %c0_6] : memref<4x32xf32, #tpu.memory_space<vmem>>, vector<4x32xf32>
    tpu.vector_store %arg5[%c0_5, %c0_6], %16 {strides = array<i32>} : memref<4x32xf32, #tpu.memory_space<vmem>>, vector<4x32xf32>,
    return
  }
  func.func @transform_0(%arg0: i32, %arg1: i32) -> (i32, i32) {
    %c0_i32 = arith.constant 0 : i32
    return %arg1, %arg0 : i32, i32
  }
  func.func @transform_1(%arg0: i32, %arg1: i32) -> (i32, i32) {
    %c0_i32 = arith.constant 0 : i32
    return %arg1, %arg0 : i32, i32
  }
  func.func @transform_2(%arg0: i32, %arg1: i32) -> (i32, i32) {
    %c0_i32 = arith.constant 0 : i32
    %c0_i32_0 = arith.constant 0 : i32
    return %c0_i32, %arg0 : i32, i32
  }
  func.func @transform_3(%arg0: i32, %arg1: i32) -> (i32, i32) {
    %c0_i32 = arith.constant 0 : i32
    return %arg1, %arg0 : i32, i32
  }
}

</mosaic_0001>

<llo_original>
// kernel: logic_layer_forward.1
$region0: #{logic_layer_forward.1}
  #allocation0 [shape = 'u32[]', space=smem, size = 0x4, offset = 0x4, fixed_abs, tag = 'smem constant byte address 0x4 - core index']
  #allocation1 [shape = 'u32[144,128]{1,0:T(1,128)}', space=vmem, size = 0x12000, scoped, tag = 'internal scratch']
  %s0 = inlined_call_operand.vmem [shape: f32[4,32], index: 0, kind: input, shape index: {}]
  %s1 = inlined_call_operand.vmem [shape: f32[4,32], index: 1, kind: input, shape index: {}]
  %s2 = inlined_call_operand.vmem [shape: f32[8,32], index: 2, kind: input, shape index: {}]
  %s3 = inlined_call_operand.hbm [shape: f32[4,32], index: 3, kind: output, shape index: {}]
  %s4 = sld [smem:[#allocation0]]
  $region22: #{logic_layer_forward.1} parent=0
    _
  %s6 = ssub.s32 1, %s4
  %s7 = scalar_select 0, %s6, %s4
  $region1: #{logic_layer_forward.1} parent=0
    #allocation2 [shape = 'u8[2048]{0}', space=vmem, size = 0x800, scoped, tag = 'output window, operand 0, single buffered']
    #allocation3 [shape = 's32[1]{0}', space=sflag, size = 0x4, scoped, tag = 'scoped memory for logic_layer_forward.1']
    %8 = vsyncpa [#allocation3], 0
    // Predicated region
    $region2: #{logic_layer_forward.1} parent=1 // pred_check
      _
    $region3: #{logic_layer_forward.1} parent=1 // pred_check_branch
      %10 = sbr.rel (0) target = $region5
    $region4: #{logic_layer_forward.1} parent=1 // pred_region
      _
    $region5: #{logic_layer_forward.1} parent=1 // pred_fallthru
      _
    // Predicated region
    $region6: #{logic_layer_forward.1} parent=1 // pred_check
      _
    $region7: #{logic_layer_forward.1} parent=1 // pred_check_branch
      %12 = sbr.rel (0) target = $region9
    $region8: #{logic_layer_forward.1} parent=1 // pred_region
      _
    $region9: #{logic_layer_forward.1} parent=1 // pred_fallthru
      _
    // Predicated region
    $region10: #{logic_layer_forward.1} parent=1 // pred_check
      _
    $region11: #{logic_layer_forward.1} parent=1 // pred_check_branch
      %14 = sbr.rel (0) target = $region13
    $region12: #{logic_layer_forward.1} parent=1 // pred_region
      _
    $region13: #{logic_layer_forward.1} parent=1 // pred_fallthru
      _
    %v15 = vld [vmem:[%s0] sm:$0xf]
    %v16 = vld [vmem:[%s1] sm:$0xf]
    %v17 = vld [vmem:[%s2] sm:$0xff]
    %v18 = vlaneseq
    %v19 = vshrl.u32 %v18, 7
    %v20 = vsub.s32 2, %v19
    %v21 = vrot.slane %v17, %v20
    %v22 = vmul.f32 %v21, %v16
    %v23 = vlaneseq
    %v24 = vshrl.u32 %v23, 7
    %v25 = vsub.s32 0, %v24
    %v26 = vrot.slane %v17, %v25
    %v27 = vadd.f32 %v26, %v22
    %v28 = vlaneseq
    %v29 = vshrl.u32 %v28, 7
    %v30 = vsub.s32 3, %v29
    %v31 = vrot.slane %v17, %v30
    %v32 = vmul.f32 %v31, %v16
    %v33 = vlaneseq
    %v34 = vshrl.u32 %v33, 7
    %v35 = vsub.s32 1, %v34
    %v36 = vrot.slane %v17, %v35
    %v37 = vadd.f32 %v36, %v32
    %v38 = vmul.f32 %v15, %v37
    %v39 = vadd.f32 %v27, %v38
    %vm40 = vcmask 257024
    %41 = vst.msk [vmem:[#allocation2] sm:$0xf] %vm40, %v39
    // Predicated region
    $region14: #{logic_layer_forward.1} parent=1 // pred_check
      _
    $region15: #{logic_layer_forward.1} parent=1 // pred_check_branch
      %43 = sbr.rel (0) target = $region17
    $region16: #{logic_layer_forward.1} parent=1 // pred_region
      %s45 = ssub.s32 64, 64
      %46 = vsyncadd [#allocation3], %s45
      %s48 = sshll.u32 [#allocation2], 4
      %s49 = int_to_ptr.vmem [resolvable:$true] %s48
      %51 = dma.vmem_to_hbm [thread:$0]  %s49, 64, %s3, [#allocation3]
    $region17: #{logic_layer_forward.1} parent=1 // pred_fallthru
      _
    // Predicated region
    $region18: #{logic_layer_forward.1} parent=1 // pred_check
      _
    $region19: #{logic_layer_forward.1} parent=1 // pred_check_branch
      %53 = sbr.rel (0) target = $region21
    $region20: #{logic_layer_forward.1} parent=1 // pred_region
      %54 = dma.done [#allocation3], 64
    $region21: #{logic_layer_forward.1} parent=1 // pred_fallthru
      _
    %55 = vsyncpa [#allocation3], 1

</llo_original>
